<compile_context>
chip_gen: v6e
topology: v6e:2x2x1
jax: 0.10.0
libtpu: 0.0.40
codegen_flags: <defaults>
</compile_context>

<pallas_src>
import functools

import jax
import jax.numpy as jnp
from jax.experimental import pallas as pl
from jax.experimental.pallas import tpu as pltpu


def _round_up(x, m):
    return ((x + m - 1) // m) * m


# ---------------------------------------------------------------------------
# Pallas kernel: fused 4-layer MLP (din -> 128 -> 128 -> 128 -> 3pad128),
# no bias.
# ---------------------------------------------------------------------------
def _atlasnet_mlp_kernel(pts_ref, w1_ref, w2_ref, w3_ref, w4_ref, out_ref,
                         *, activation, din):
    if activation == "relu":
        act = lambda v: jnp.maximum(v, 0.0)
    elif activation == "softplus":
        # numerically-stable softplus
        act = lambda v: jnp.maximum(v, 0.0) + jnp.log1p(jnp.exp(-jnp.abs(v)))
    else:
        raise ValueError(activation)

    x = pts_ref[...]                                        # (tp, din) f32

    # Layer 1: contraction depth is only din (2 or 3) -> an MXU pass would be
    # wasted; do it as `din` broadcast multiply-adds on the VPU instead.
    h = x[:, 0:1] * w1_ref[0:1, :]                          # (tp,1)*(1,H)
    for k in range(1, din):
        h = h + x[:, k:k + 1] * w1_ref[k:k + 1, :]
    h = act(h)                                              # (tp, H) f32

    cdt = w2_ref.dtype                                      # f32 or bf16
    h = act(jnp.dot(h.astype(cdt), w2_ref[...],
                    preferred_element_type=jnp.float32))
    h = act(jnp.dot(h.astype(cdt), w3_ref[...],
                    preferred_element_type=jnp.float32))

    # Layer 4: output padded to 128 lanes (zero weight columns) so the store
    # is lane-dense (unmasked vst) instead of a 3-wide masked partial store.
    out_ref[...] = jnp.dot(h.astype(w4_ref.dtype), w4_ref[...],
                           preferred_element_type=jnp.float32)


def atlasnet_decode(points, w1t, w2t, w3t, w4t, *, activation="relu",
                    tile_p=2048, compute_dtype=jnp.float32):
    """points: (P, din) f32; w*t: (in, out) f32.  Returns (P, 3) f32.

    Handles arbitrary P by padding up to the point tile; the weights for
    layers 2-4 may be computed in bf16 (f32 accumulation) via compute_dtype.
    """
    P, din = points.shape
    hidden = w1t.shape[1]
    dout = w4t.shape[1]
    OUT_PAD = 128                       # lane-dense output width

    # Tile choice: a single grid step for small P, otherwise tile_p-sized
    # steps (multiple of 8 sublanes); pad P up to the tile.
    tp = min(tile_p, _round_up(P, 8))
    tp = _round_up(tp, 8)
    P_pad = _round_up(P, tp)

    pts = points if P_pad == P else jnp.pad(points, ((0, P_pad - P), (0, 0)))

    # Pad the last layer to 128 output lanes with zero columns.
    w4p = jnp.pad(w4t, ((0, 0), (0, OUT_PAD - dout)))

    w2c = w2t.astype(compute_dtype)
    w3c = w3t.astype(compute_dtype)
    w4c = w4p.astype(compute_dtype)

    kernel = functools.partial(_atlasnet_mlp_kernel,
                               activation=activation, din=din)

    grid_spec = pltpu.PrefetchScalarGridSpec(
        num_scalar_prefetch=0,
        grid=(P_pad // tp,),
        in_specs=[
            pl.BlockSpec((tp, din), lambda i: (i, 0)),        # points tile
            pl.BlockSpec((din, hidden), lambda i: (0, 0)),    # W1^T (full)
            pl.BlockSpec((hidden, hidden), lambda i: (0, 0)),  # W2^T
            pl.BlockSpec((hidden, hidden), lambda i: (0, 0)),  # W3^T
            pl.BlockSpec((hidden, OUT_PAD), lambda i: (0, 0)),  # W4^T padded
        ],
        out_specs=pl.BlockSpec((tp, OUT_PAD), lambda i: (i, 0)),
    )

    out = pl.pallas_call(
        kernel,
        out_shape=jax.ShapeDtypeStruct((P_pad, OUT_PAD), jnp.float32),
        grid_spec=grid_spec,
        compiler_params=pltpu.CompilerParams(
            dimension_semantics=("parallel",),
            vmem_limit_bytes=64 * 1024 * 1024,
        ),
    )(pts, w1t, w2c, w3c, w4c)

    return out[:P, :dout]


# ---------------------------------------------------------------------------
# Atlasnet module (parameter setup + forward glue in plain JAX)
# ---------------------------------------------------------------------------
class AtlasnetJax:
    def __init__(self, num_points_per_primitive, num_primitives, code_size,
                 activation, primitive_type="square", use_bias=False,
                 key=None, tile_p=2048, compute_dtype=jnp.float32):
        assert not use_bias, "reference default (use_bias=False) implemented"
        if primitive_type == "square":
            self.input_point_dim = 2
        elif primitive_type == "sphere":
            self.input_point_dim = 3
        else:
            raise Exception(f"Unknown primitive type {primitive_type}")
        self.primitive_type = primitive_type
        self.num_points_per_primitive = num_points_per_primitive
        self.hidden_neurons = 128
        self.num_layers = 2
        self.dim_output = 3
        self.activation = activation
        self.tile_p = tile_p
        self.compute_dtype = compute_dtype

        if key is None:
            key = jax.random.PRNGKey(0)
        k1, k2, k3, k4 = jax.random.split(key, 4)
        scale = 0.1
        # weights stored transposed (in, out) relative to nn.Linear's (out, in)
        self.w1t = scale * jax.random.normal(
            k1, (self.input_point_dim, self.hidden_neurons), jnp.float32)
        self.w2t = scale * jax.random.normal(
            k2, (self.hidden_neurons, self.hidden_neurons), jnp.float32)
        self.w3t = scale * jax.random.normal(
            k3, (self.hidden_neurons, self.hidden_neurons), jnp.float32)
        self.w4t = scale * jax.random.normal(
            k4, (self.hidden_neurons, self.dim_output), jnp.float32)

    def _get_random_points(self, npoints, key):
        if self.primitive_type == "square":
            # SquareTemplate.get_random_points: uniform in [-1, 1]^2
            return jax.random.uniform(key, (npoints, 2), jnp.float32,
                                      minval=-1.0, maxval=1.0)
        # SphereTemplate.get_random_points: normalize(randn*2 - 1)
        p = jax.random.normal(key, (npoints, 3), jnp.float32) * 2.0 - 1.0
        return p / jnp.linalg.norm(p, axis=-1, keepdims=True)

    def _decode(self, pts):
        return atlasnet_decode(pts, self.w1t, self.w2t, self.w3t, self.w4t,
                               activation=self.activation,
                               tile_p=self.tile_p,
                               compute_dtype=self.compute_dtype)

    def forward(self, key):
        input_points = self._get_random_points(
            self.num_points_per_primitive, key)             # (P, din)
        out = self._decode(input_points)                    # (P, 3)
        # PyTorch: last_linear(x) on the batched (1,P,H) input, then
        # .unsqueeze(1) -> (1, 1, P, 3)
        output_points = out[None, None, :, :]
        return input_points, output_points

    def map(self, uvs):
        """uvs: (N, ..., P, din) -> (N, ..., P, 3)"""
        assert uvs.shape[-1] == self.input_point_dim
        flat = uvs.reshape(-1, self.input_point_dim)
        out = self._decode(flat)                            # padding internal
        return out.reshape(uvs.shape[:-1] + (3,))


# ---------------------------------------------------------------------------
# Pure-JAX reference for correctness check
# ---------------------------------------------------------------------------
def _reference(points, w1t, w2t, w3t, w4t):
    act = lambda v: jnp.maximum(v, 0.0)
    h = act(points @ w1t)
    h = act(h @ w2t)
    h = act(h @ w3t)
    return h @ w4t


if __name__ == "__main__":
    key = jax.random.PRNGKey(0)
    k_params, k_points, k_uv = jax.random.split(key, 3)

    num_points = 256           # small demo shape (not a multiple of the tile)
    model = AtlasnetJax(num_points_per_primitive=num_points,
                        num_primitives=1, code_size=32,
                        activation="relu", primitive_type="square",
                        use_bias=False, key=k_params)

    # --- f32 path ---------------------------------------------------------
    input_points, output_points = model.forward(k_points)
    output_points = jax.block_until_ready(output_points)

    assert input_points.shape == (num_points, 2)
    assert output_points.shape == (1, 1, num_points, 3)

    ref = _reference(input_points, model.w1t, model.w2t, model.w3t, model.w4t)
    assert jnp.allclose(output_points[0, 0], ref, atol=1e-5, rtol=1e-5), (
        float(jnp.max(jnp.abs(output_points[0, 0] - ref))))

    # --- map() path (exercises pad-to-tile handling) -----------------------
    uvs = jax.random.uniform(k_uv, (2, 40, 2), jnp.float32,
                             minval=-1.0, maxval=1.0)
    mapped = jax.block_until_ready(model.map(uvs))
    ref_map = _reference(uvs.reshape(-1, 2), model.w1t, model.w2t,
                         model.w3t, model.w4t).reshape(2, 40, 3)
    assert jnp.allclose(mapped, ref_map, atol=1e-5, rtol=1e-5)

    # --- optional bf16 MXU path (v6e/v7x) -- looser tolerance --------------
    out_bf16 = atlasnet_decode(input_points, model.w1t, model.w2t,
                               model.w3t, model.w4t, activation="relu",
                               compute_dtype=jnp.bfloat16)
    out_bf16 = jax.block_until_ready(out_bf16)
    assert float(jnp.max(jnp.abs(out_bf16 - ref))) < 5e-2

    print("KERNEL_OK")
</pallas_src>

<mosaic_0001>
module attributes {stable_mosaic.version = 11 : i64} {
  func.func @_atlasnet_mlp_kernel(%arg0: i32, %arg1: memref<256x2xf32, #tpu.memory_space<vmem>>, %arg2: memref<2x128xf32, #tpu.memory_space<vmem>>, %arg3: memref<128x128xf32, #tpu.memory_space<vmem>>, %arg4: memref<128x128xf32, #tpu.memory_space<vmem>>, %arg5: memref<128x128xf32, #tpu.memory_space<vmem>>, %arg6: memref<256x128xf32, #tpu.memory_space<vmem>>) attributes {dimension_semantics = [#tpu.dimension_semantics<parallel>], iteration_bounds = array<i64: 1>, scalar_prefetch = 0 : i64, scratch_operands = 0 : i64, tpu.core_type = #tpu.core_type<tc>, window_params = [{transform_indices = @transform_0, window_bounds = array<i64: 256, 2>}, {pipeline_mode = #tpu.pipeline_mode<synchronous>, transform_indices = @transform_1, window_bounds = array<i64: 2, 128>}, {pipeline_mode = #tpu.pipeline_mode<synchronous>, transform_indices = @transform_2, window_bounds = array<i64: 128, 128>}, {pipeline_mode = #tpu.pipeline_mode<synchronous>, transform_indices = @transform_3, window_bounds = array<i64: 128, 128>}, {pipeline_mode = #tpu.pipeline_mode<synchronous>, transform_indices = @transform_4, window_bounds = array<i64: 128, 128>}, {transform_indices = @transform_5, window_bounds = array<i64: 256, 128>}]} {
    %c0 = arith.constant 0 : index
    %c0_0 = arith.constant 0 : index
    %0 = vector.load %arg1[%c0, %c0_0] : memref<256x2xf32, #tpu.memory_space<vmem>>, vector<256x2xf32>
    %1 = vector.extract_strided_slice %0 {offsets = [0, 0], sizes = [256, 1], strides = [1, 1]} : vector<256x2xf32> to vector<256x1xf32>
    %c0_1 = arith.constant 0 : index
    %c0_2 = arith.constant 0 : index
    %2 = vector.load %arg2[%c0_1, %c0_2] : memref<2x128xf32, #tpu.memory_space<vmem>>, vector<1x128xf32>
    %3 = vector.broadcast %1 : vector<256x1xf32> to vector<256x128xf32>
    %4 = vector.broadcast %2 : vector<1x128xf32> to vector<256x128xf32>
    %5 = arith.mulf %3, %4 : vector<256x128xf32>
    %6 = vector.extract_strided_slice %0 {offsets = [0, 1], sizes = [256, 1], strides = [1, 1]} : vector<256x2xf32> to vector<256x1xf32>
    %c1 = arith.constant 1 : index
    %c0_3 = arith.constant 0 : index
    %7 = vector.load %arg2[%c1, %c0_3] : memref<2x128xf32, #tpu.memory_space<vmem>>, vector<1x128xf32>
    %8 = vector.broadcast %6 : vector<256x1xf32> to vector<256x128xf32>
    %9 = vector.broadcast %7 : vector<1x128xf32> to vector<256x128xf32>
    %10 = arith.mulf %8, %9 : vector<256x128xf32>
    %11 = arith.addf %5, %10 : vector<256x128xf32>
    %cst = arith.constant 0.000000e+00 : f32
    %12 = vector.broadcast %cst : f32 to vector<256x128xf32>
    %13 = arith.maximumf %11, %12 : vector<256x128xf32>
    %c0_4 = arith.constant 0 : index
    %c0_5 = arith.constant 0 : index
    %14 = vector.load %arg3[%c0_4, %c0_5] : memref<128x128xf32, #tpu.memory_space<vmem>>, vector<128x128xf32>
    %cst_6 = arith.constant dense<0.000000e+00> : vector<256x128xf32>
    %15 = tpu.matmul %13, %14, %cst_6 {dimension_numbers = #tpu.dot_dimension_numbers<[1], [0], [0], [1], [0, 0, 1, 1], [], []>} : vector<256x128xf32>, vector<128x128xf32>, vector<256x128xf32> -> vector<256x128xf32>
    %cst_7 = arith.constant 0.000000e+00 : f32
    %16 = vector.broadcast %cst_7 : f32 to vector<256x128xf32>
    %17 = arith.maximumf %15, %16 : vector<256x128xf32>
    %c0_8 = arith.constant 0 : index
    %c0_9 = arith.constant 0 : index
    %18 = vector.load %arg4[%c0_8, %c0_9] : memref<128x128xf32, #tpu.memory_space<vmem>>, vector<128x128xf32>
    %cst_10 = arith.constant dense<0.000000e+00> : vector<256x128xf32>
    %19 = tpu.matmul %17, %18, %cst_10 {dimension_numbers = #tpu.dot_dimension_numbers<[1], [0], [0], [1], [0, 0, 1, 1], [], []>} : vector<256x128xf32>, vector<128x128xf32>, vector<256x128xf32> -> vector<256x128xf32>
    %cst_11 = arith.constant 0.000000e+00 : f32
    %20 = vector.broadcast %cst_11 : f32 to vector<256x128xf32>
    %21 = arith.maximumf %19, %20 : vector<256x128xf32>
    %c0_12 = arith.constant 0 : index
    %c0_13 = arith.constant 0 : index
    %22 = vector.load %arg5[%c0_12, %c0_13] : memref<128x128xf32, #tpu.memory_space<vmem>>, vector<128x128xf32>
    %cst_14 = arith.constant dense<0.000000e+00> : vector<256x128xf32>
    %23 = tpu.matmul %21, %22, %cst_14 {dimension_numbers = #tpu.dot_dimension_numbers<[1], [0], [0], [1], [0, 0, 1, 1], [], []>} : vector<256x128xf32>, vector<128x128xf32>, vector<256x128xf32> -> vector<256x128xf32>
    %c0_15 = arith.constant 0 : index
    %c0_16 = arith.constant 0 : index
    %24 = vector.load %arg6[%c0_15, %c0_16] : memref<256x128xf32, #tpu.memory_space<vmem>>, vector<256x128xf32>
    tpu.vector_store %arg6[%c0_15, %c0_16], %23 {strides = array<i32>} : memref<256x128xf32, #tpu.memory_space<vmem>>, vector<256x128xf32>,
    return
  }
  func.func @transform_0(%arg0: i32) -> (i32, i32) {
    %c0_i32 = arith.constant 0 : i32
    %c0_i32_0 = arith.constant 0 : i32
    return %arg0, %c0_i32 : i32, i32
  }
  func.func @transform_1(%arg0: i32) -> (i32, i32) {
    %c0_i32 = arith.constant 0 : i32
    %c0_i32_0 = arith.constant 0 : i32
    %c0_i32_1 = arith.constant 0 : i32
    return %c0_i32, %c0_i32_0 : i32, i32
  }
  func.func @transform_2(%arg0: i32) -> (i32, i32) {
    %c0_i32 = arith.constant 0 : i32
    %c0_i32_0 = arith.constant 0 : i32
    %c0_i32_1 = arith.constant 0 : i32
    return %c0_i32, %c0_i32_0 : i32, i32
  }
  func.func @transform_3(%arg0: i32) -> (i32, i32) {
    %c0_i32 = arith.constant 0 : i32
    %c0_i32_0 = arith.constant 0 : i32
    %c0_i32_1 = arith.constant 0 : i32
    return %c0_i32, %c0_i32_0 : i32, i32
  }
  func.func @transform_4(%arg0: i32) -> (i32, i32) {
    %c0_i32 = arith.constant 0 : i32
    %c0_i32_0 = arith.constant 0 : i32
    %c0_i32_1 = arith.constant 0 : i32
    return %c0_i32, %c0_i32_0 : i32, i32
  }
  func.func @transform_5(%arg0: i32) -> (i32, i32) {
    %c0_i32 = arith.constant 0 : i32
    %c0_i32_0 = arith.constant 0 : i32
    return %arg0, %c0_i32 : i32, i32
  }
}

</mosaic_0001>

<llo_original>
// kernel: tpu_custom_call.1
$region0: #{tpu_custom_call.1}
  #allocation0 [shape = 'u32[]', space=smem, size = 0x4, offset = 0x4, fixed_abs, tag = 'smem constant byte address 0x4 - core index']
  #allocation1 [shape = 'u32[144,128]{1,0:T(1,128)}', space=vmem, size = 0x12000, scoped, tag = 'internal scratch']
  %s0 = inlined_call_operand.vmem [shape: f32[256,2], index: 0, kind: input, shape index: {}]
  %s1 = inlined_call_operand.vmem [shape: f32[2,128], index: 1, kind: input, shape index: {}]
  %s2 = inlined_call_operand.vmem [shape: f32[128,128], index: 2, kind: input, shape index: {}]
  %s3 = inlined_call_operand.vmem [shape: f32[128,128], index: 3, kind: input, shape index: {}]
  %s4 = inlined_call_operand.hbm [shape: f32[128,128], index: 4, kind: input, shape index: {}]
  %s5 = inlined_call_operand.hbm [shape: f32[256,128], index: 5, kind: output, shape index: {}]
  %s6 = sld [smem:[#allocation0]]
  $region34: #{tpu_custom_call.1} parent=0
    _
  %s8 = ssub.s32 1, %s6
  %s9 = scalar_select 0, %s8, %s6
  $region1: #{tpu_custom_call.1} parent=0
    #allocation2 [shape = 'u8[65536]{0}', space=vmem, size = 0x10000, scoped, tag = 'input window, operand 4, single buffered']
    #allocation3 [shape = 's32[1]{0}', space=sflag, size = 0x4, scoped, tag = 'scoped memory for tpu_custom_call.1']
    #allocation4 [shape = 's32[1]{0}', space=sflag, size = 0x4, scoped, tag = 'scoped memory for tpu_custom_call.1']
    #allocation5 [shape = 'u8[131072]{0}', space=vmem, size = 0x20000, scoped, tag = 'output window, operand 0, single buffered']
    %10 = vsyncpa [#allocation3], 0
    %11 = vsyncpa [#allocation4], 0
    // Predicated region
    $region2: #{tpu_custom_call.1} parent=1 // pred_check
      _
    $region3: #{tpu_custom_call.1} parent=1 // pred_check_branch
      %13 = sbr.rel (0) target = $region5
    $region4: #{tpu_custom_call.1} parent=1 // pred_region
      _
    $region5: #{tpu_custom_call.1} parent=1 // pred_fallthru
      _
    // Predicated region
    $region6: #{tpu_custom_call.1} parent=1 // pred_check
      _
    $region7: #{tpu_custom_call.1} parent=1 // pred_check_branch
      %15 = sbr.rel (0) target = $region9
    $region8: #{tpu_custom_call.1} parent=1 // pred_region
      _
    $region9: #{tpu_custom_call.1} parent=1 // pred_fallthru
      _
    // Predicated region
    $region10: #{tpu_custom_call.1} parent=1 // pred_check
      _
    $region11: #{tpu_custom_call.1} parent=1 // pred_check_branch
      %17 = sbr.rel (0) target = $region13
    $region12: #{tpu_custom_call.1} parent=1 // pred_region
      _
    $region13: #{tpu_custom_call.1} parent=1 // pred_fallthru
      _
    // Predicated region
    $region14: #{tpu_custom_call.1} parent=1 // pred_check
      _
    $region15: #{tpu_custom_call.1} parent=1 // pred_check_branch
      %19 = sbr.rel (0) target = $region17
    $region16: #{tpu_custom_call.1} parent=1 // pred_region
      _
    $region17: #{tpu_custom_call.1} parent=1 // pred_fallthru
      _
    // Predicated region
    $region18: #{tpu_custom_call.1} parent=1 // pred_check
      _
    $region19: #{tpu_custom_call.1} parent=1 // pred_check_branch
      %21 = sbr.rel (0) target = $region21
    $region20: #{tpu_custom_call.1} parent=1 // pred_region
      %s23 = ssub.s32 2048, 2048
      %24 = vsyncadd [#allocation3], %s23
      %s25 = sshll.u32 [#allocation2], 4
      %s26 = int_to_ptr.vmem [resolvable:$true] %s25
      %31 = dma.hbm_to_vmem [thread:$0]  %s4, 2048, %s26, [#allocation3], 128, 128, 8
    $region21: #{tpu_custom_call.1} parent=1 // pred_fallthru
      _
    // Predicated region
    $region22: #{tpu_custom_call.1} parent=1 // pred_check
      _
    $region23: #{tpu_custom_call.1} parent=1 // pred_check_branch
      %33 = sbr.rel (0) target = $region25
    $region24: #{tpu_custom_call.1} parent=1 // pred_region
      %34 = dma.done [#allocation3], 2048
    $region25: #{tpu_custom_call.1} parent=1 // pred_fallthru
      _
    %v35 = vld [vmem:[%s0] sm:$0xff]
    %v36 = vld [vmem:[%s0 + $0x8] sm:$0xff]
    %v37 = vld [vmem:[%s0 + $0x10] sm:$0xff]
    %v38 = vld [vmem:[%s0 + $0x18] sm:$0xff]
    %v39 = vld [vmem:[%s0 + $0x20] sm:$0xff]
    %v40 = vld [vmem:[%s0 + $0x28] sm:$0xff]
    %v41 = vld [vmem:[%s0 + $0x30] sm:$0xff]
    %v42 = vld [vmem:[%s0 + $0x38] sm:$0xff]
    %v43 = vld [vmem:[%s0 + $0x40] sm:$0xff]
    %v44 = vld [vmem:[%s0 + $0x48] sm:$0xff]
    %v45 = vld [vmem:[%s0 + $0x50] sm:$0xff]
    %v46 = vld [vmem:[%s0 + $0x58] sm:$0xff]
    %v47 = vld [vmem:[%s0 + $0x60] sm:$0xff]
    %v48 = vld [vmem:[%s0 + $0x68] sm:$0xff]
    %v49 = vld [vmem:[%s0 + $0x70] sm:$0xff]
    %v50 = vld [vmem:[%s0 + $0x78] sm:$0xff]
    %v51 = vld [vmem:[%s0 + $0x80] sm:$0xff]
    %v52 = vld [vmem:[%s0 + $0x88] sm:$0xff]
    %v53 = vld [vmem:[%s0 + $0x90] sm:$0xff]
    %v54 = vld [vmem:[%s0 + $0x98] sm:$0xff]
    %v55 = vld [vmem:[%s0 + $0xa0] sm:$0xff]
    %v56 = vld [vmem:[%s0 + $0xa8] sm:$0xff]
    %v57 = vld [vmem:[%s0 + $0xb0] sm:$0xff]
    %v58 = vld [vmem:[%s0 + $0xb8] sm:$0xff]
    %v59 = vld [vmem:[%s0 + $0xc0] sm:$0xff]
    %v60 = vld [vmem:[%s0 + $0xc8] sm:$0xff]
    %v61 = vld [vmem:[%s0 + $0xd0] sm:$0xff]
    %v62 = vld [vmem:[%s0 + $0xd8] sm:$0xff]
    %v63 = vld [vmem:[%s0 + $0xe0] sm:$0xff]
    %v64 = vld [vmem:[%s0 + $0xe8] sm:$0xff]
    %v65 = vld [vmem:[%s0 + $0xf0] sm:$0xff]
    %v66 = vld [vmem:[%s0 + $0xf8] sm:$0xff]
    %v67 = vld [vmem:[%s1] sm:$0x1]
    %69 = vset.pattern.permute.xlu0 0
    %70 = vperm.xlu0 %69, %v35
    %v71 = vpop.permute.xlu0 %70
    %74 = vset.pattern.permute.xlu0 0
    %75 = vperm.xlu0 %74, %v36
    %v76 = vpop.permute.xlu0 %75
    %79 = vset.pattern.permute.xlu0 0
    %80 = vperm.xlu0 %79, %v37
    %v81 = vpop.permute.xlu0 %80
    %84 = vset.pattern.permute.xlu0 0
    %85 = vperm.xlu0 %84, %v38
    %v86 = vpop.permute.xlu0 %85
    %89 = vset.pattern.permute.xlu0 0
    %90 = vperm.xlu0 %89, %v39
    %v91 = vpop.permute.xlu0 %90
    %94 = vset.pattern.permute.xlu0 0
    %95 = vperm.xlu0 %94, %v40
    %v96 = vpop.permute.xlu0 %95
    %99 = vset.pattern.permute.xlu0 0
    %100 = vperm.xlu0 %99, %v41
    %v101 = vpop.permute.xlu0 %100
    %104 = vset.pattern.permute.xlu0 0
    %105 = vperm.xlu0 %104, %v42
    %v106 = vpop.permute.xlu0 %105
    %109 = vset.pattern.permute.xlu0 0
    %110 = vperm.xlu0 %109, %v43
    %v111 = vpop.permute.xlu0 %110
    %114 = vset.pattern.permute.xlu0 0
    %115 = vperm.xlu0 %114, %v44
    %v116 = vpop.permute.xlu0 %115
    %119 = vset.pattern.permute.xlu0 0
    %120 = vperm.xlu0 %119, %v45
    %v121 = vpop.permute.xlu0 %120
    %124 = vset.pattern.permute.xlu0 0
    %125 = vperm.xlu0 %124, %v46
    %v126 = vpop.permute.xlu0 %125
    %129 = vset.pattern.permute.xlu0 0
    %130 = vperm.xlu0 %129, %v47
    %v131 = vpop.permute.xlu0 %130
    %134 = vset.pattern.permute.xlu0 0
    %135 = vperm.xlu0 %134, %v48
    %v136 = vpop.permute.xlu0 %135
    %139 = vset.pattern.permute.xlu0 0
    %140 = vperm.xlu0 %139, %v49
    %v141 = vpop.permute.xlu0 %140
    %144 = vset.pattern.permute.xlu0 0
    %145 = vperm.xlu0 %144, %v50
    %v146 = vpop.permute.xlu0 %145
    %149 = vset.pattern.permute.xlu0 0
    %150 = vperm.xlu0 %149, %v51
    %v151 = vpop.permute.xlu0 %150
    %154 = vset.pattern.permute.xlu0 0
    %155 = vperm.xlu0 %154, %v52
    %v156 = vpop.permute.xlu0 %155
    %159 = vset.pattern.permute.xlu0 0
    %160 = vperm.xlu0 %159, %v53
    %v161 = vpop.permute.xlu0 %160
    %164 = vset.pattern.permute.xlu0 0
    %165 = vperm.xlu0 %164, %v54
    %v166 = vpop.permute.xlu0 %165
    %169 = vset.pattern.permute.xlu0 0
    %170 = vperm.xlu0 %169, %v55
    %v171 = vpop.permute.xlu0 %170
    %174 = vset.pattern.permute.xlu0 0
    %175 = vperm.xlu0 %174, %v56
    %v176 = vpop.permute.xlu0 %175
    %179 = vset.pattern.permute.xlu0 0
    %180 = vperm.xlu0 %179, %v57
    %v181 = vpop.permute.xlu0 %180
    %184 = vset.pattern.permute.xlu0 0
    %185 = vperm.xlu0 %184, %v58
    %v186 = vpop.permute.xlu0 %185
    %189 = vset.pattern.permute.xlu0 0
    %190 = vperm.xlu0 %189, %v59
    %v191 = vpop.permute.xlu0 %190
    %194 = vset.pattern.permute.xlu0 0
    %195 = vperm.xlu0 %194, %v60
    %v196 = vpop.permute.xlu0 %195
    %199 = vset.pattern.permute.xlu0 0
    %200 = vperm.xlu0 %199, %v61
    %v201 = vpop.permute.xlu0 %200
    %204 = vset.pattern.permute.xlu0 0
    %205 = vperm.xlu0 %204, %v62
    %v206 = vpop.permute.xlu0 %205
    %209 = vset.pattern.permute.xlu0 0
    %210 = vperm.xlu0 %209, %v63
    %v211 = vpop.permute.xlu0 %210
    %214 = vset.pattern.permute.xlu0 0
    %215 = vperm.xlu0 %214, %v64
    %v216 = vpop.permute.xlu0 %215
    %219 = vset.pattern.permute.xlu0 0
    %220 = vperm.xlu0 %219, %v65
    %v221 = vpop.permute.xlu0 %220
    %224 = vset.pattern.permute.xlu0 0
    %225 = vperm.xlu0 %224, %v66
    %v226 = vpop.permute.xlu0 %225
    %v228 = vlaneseq
    %v229 = vshrl.u32 %v228, 7
    %v230 = vsub.s32 0, %v229
    %v231 = vrot.slane %v67, %v230
    %v232 = vmul.f32 %v71, %v231
    %v233 = vmul.f32 %v76, %v231
    %v234 = vmul.f32 %v81, %v231
    %v235 = vmul.f32 %v86, %v231
    %v236 = vmul.f32 %v91, %v231
    %v237 = vmul.f32 %v96, %v231
    %v238 = vmul.f32 %v101, %v231
    %v239 = vmul.f32 %v106, %v231
    %v240 = vmul.f32 %v111, %v231
    %v241 = vmul.f32 %v116, %v231
    %v242 = vmul.f32 %v121, %v231
    %v243 = vmul.f32 %v126, %v231
    %v244 = vmul.f32 %v131, %v231
    %v245 = vmul.f32 %v136, %v231
    %v246 = vmul.f32 %v141, %v231
    %v247 = vmul.f32 %v146, %v231
    %v248 = vmul.f32 %v151, %v231
    %v249 = vmul.f32 %v156, %v231
    %v250 = vmul.f32 %v161, %v231
    %v251 = vmul.f32 %v166, %v231
    %v252 = vmul.f32 %v171, %v231
    %v253 = vmul.f32 %v176, %v231
    %v254 = vmul.f32 %v181, %v231
    %v255 = vmul.f32 %v186, %v231
    %v256 = vmul.f32 %v191, %v231
    %v257 = vmul.f32 %v196, %v231
    %v258 = vmul.f32 %v201, %v231
    %v259 = vmul.f32 %v206, %v231
    %v260 = vmul.f32 %v211, %v231
    %v261 = vmul.f32 %v216, %v231
    %v262 = vmul.f32 %v221, %v231
    %v263 = vmul.f32 %v226, %v231
    %v264 = vld [vmem:[%s1 + $0x1] sm:$0x1]
    %265 = vset.pattern.permute.xlu0 1
    %266 = vperm.xlu0 %265, %v35
    %v267 = vpop.permute.xlu0 %266
    %269 = vset.pattern.permute.xlu0 1
    %270 = vperm.xlu0 %269, %v36
    %v271 = vpop.permute.xlu0 %270
    %273 = vset.pattern.permute.xlu0 1
    %274 = vperm.xlu0 %273, %v37
    %v275 = vpop.permute.xlu0 %274
    %277 = vset.pattern.permute.xlu0 1
    %278 = vperm.xlu0 %277, %v38
    %v279 = vpop.permute.xlu0 %278
    %281 = vset.pattern.permute.xlu0 1
    %282 = vperm.xlu0 %281, %v39
    %v283 = vpop.permute.xlu0 %282
    %285 = vset.pattern.permute.xlu0 1
    %286 = vperm.xlu0 %285, %v40
    %v287 = vpop.permute.xlu0 %286
    %289 = vset.pattern.permute.xlu0 1
    %290 = vperm.xlu0 %289, %v41
    %v291 = vpop.permute.xlu0 %290
    %293 = vset.pattern.permute.xlu0 1
    %294 = vperm.xlu0 %293, %v42
    %v295 = vpop.permute.xlu0 %294
    %297 = vset.pattern.permute.xlu0 1
    %298 = vperm.xlu0 %297, %v43
    %v299 = vpop.permute.xlu0 %298
    %301 = vset.pattern.permute.xlu0 1
    %302 = vperm.xlu0 %301, %v44
    %v303 = vpop.permute.xlu0 %302
    %305 = vset.pattern.permute.xlu0 1
    %306 = vperm.xlu0 %305, %v45
    %v307 = vpop.permute.xlu0 %306
    %309 = vset.pattern.permute.xlu0 1
    %310 = vperm.xlu0 %309, %v46
    %v311 = vpop.permute.xlu0 %310
    %313 = vset.pattern.permute.xlu0 1
    %314 = vperm.xlu0 %313, %v47
    %v315 = vpop.permute.xlu0 %314
    %317 = vset.pattern.permute.xlu0 1
    %318 = vperm.xlu0 %317, %v48
    %v319 = vpop.permute.xlu0 %318
    %321 = vset.pattern.permute.xlu0 1
    %322 = vperm.xlu0 %321, %v49
    %v323 = vpop.permute.xlu0 %322
    %325 = vset.pattern.permute.xlu0 1
    %326 = vperm.xlu0 %325, %v50
    %v327 = vpop.permute.xlu0 %326
    %329 = vset.pattern.permute.xlu0 1
    %330 = vperm.xlu0 %329, %v51
    %v331 = vpop.permute.xlu0 %330
    %333 = vset.pattern.permute.xlu0 1
    %334 = vperm.xlu0 %333, %v52
    %v335 = vpop.permute.xlu0 %334
    %337 = vset.pattern.permute.xlu0 1
    %338 = vperm.xlu0 %337, %v53
    %v339 = vpop.permute.xlu0 %338
    %341 = vset.pattern.permute.xlu0 1
    %342 = vperm.xlu0 %341, %v54
    %v343 = vpop.permute.xlu0 %342
    %345 = vset.pattern.permute.xlu0 1
    %346 = vperm.xlu0 %345, %v55
    %v347 = vpop.permute.xlu0 %346
    %349 = vset.pattern.permute.xlu0 1
    %350 = vperm.xlu0 %349, %v56
    %v351 = vpop.permute.xlu0 %350
    %353 = vset.pattern.permute.xlu0 1
    %354 = vperm.xlu0 %353, %v57
    %v355 = vpop.permute.xlu0 %354
    %357 = vset.pattern.permute.xlu0 1
    %358 = vperm.xlu0 %357, %v58
    %v359 = vpop.permute.xlu0 %358
    %361 = vset.pattern.permute.xlu0 1
    %362 = vperm.xlu0 %361, %v59
    %v363 = vpop.permute.xlu0 %362
    %365 = vset.pattern.permute.xlu0 1
    %366 = vperm.xlu0 %365, %v60
    %v367 = vpop.permute.xlu0 %366
    %369 = vset.pattern.permute.xlu0 1
    %370 = vperm.xlu0 %369, %v61
    %v371 = vpop.permute.xlu0 %370
    %373 = vset.pattern.permute.xlu0 1
    %374 = vperm.xlu0 %373, %v62
    %v375 = vpop.permute.xlu0 %374
    %377 = vset.pattern.permute.xlu0 1
    %378 = vperm.xlu0 %377, %v63
    %v379 = vpop.permute.xlu0 %378
    %381 = vset.pattern.permute.xlu0 1
    %382 = vperm.xlu0 %381, %v64
    %v383 = vpop.permute.xlu0 %382
    %385 = vset.pattern.permute.xlu0 1
    %386 = vperm.xlu0 %385, %v65
    %v387 = vpop.permute.xlu0 %386
    %389 = vset.pattern.permute.xlu0 1
    %390 = vperm.xlu0 %389, %v66
    %v391 = vpop.permute.xlu0 %390
    %v393 = vlaneseq
    %v394 = vshrl.u32 %v393, 7
    %v395 = vsub.s32 0, %v394
    %v396 = vrot.slane %v264, %v395
    %v397 = vmul.f32 %v267, %v396
    %v398 = vmul.f32 %v271, %v396
    %v399 = vmul.f32 %v275, %v396
    %v400 = vmul.f32 %v279, %v396
    %v401 = vmul.f32 %v283, %v396
    %v402 = vmul.f32 %v287, %v396
    %v403 = vmul.f32 %v291, %v396
    %v404 = vmul.f32 %v295, %v396
    %v405 = vmul.f32 %v299, %v396
    %v406 = vmul.f32 %v303, %v396
    %v407 = vmul.f32 %v307, %v396
    %v408 = vmul.f32 %v311, %v396
    %v409 = vmul.f32 %v315, %v396
    %v410 = vmul.f32 %v319, %v396
    %v411 = vmul.f32 %v323, %v396
    %v412 = vmul.f32 %v327, %v396
    %v413 = vmul.f32 %v331, %v396
    %v414 = vmul.f32 %v335, %v396
    %v415 = vmul.f32 %v339, %v396
    %v416 = vmul.f32 %v343, %v396
    %v417 = vmul.f32 %v347, %v396
    %v418 = vmul.f32 %v351, %v396
    %v419 = vmul.f32 %v355, %v396
    %v420 = vmul.f32 %v359, %v396
    %v421 = vmul.f32 %v363, %v396
    %v422 = vmul.f32 %v367, %v396
    %v423 = vmul.f32 %v371, %v396
    %v424 = vmul.f32 %v375, %v396
    %v425 = vmul.f32 %v379, %v396
    %v426 = vmul.f32 %v383, %v396
    %v427 = vmul.f32 %v387, %v396
    %v428 = vmul.f32 %v391, %v396
    %v429 = vadd.f32 %v232, %v397
    %v430 = vadd.f32 %v233, %v398
    %v431 = vadd.f32 %v234, %v399
    %v432 = vadd.f32 %v235, %v400
    %v433 = vadd.f32 %v236, %v401
    %v434 = vadd.f32 %v237, %v402
    %v435 = vadd.f32 %v238, %v403
    %v436 = vadd.f32 %v239, %v404
    %v437 = vadd.f32 %v240, %v405
    %v438 = vadd.f32 %v241, %v406
    %v439 = vadd.f32 %v242, %v407
    %v440 = vadd.f32 %v243, %v408
    %v441 = vadd.f32 %v244, %v409
    %v442 = vadd.f32 %v245, %v410
    %v443 = vadd.f32 %v246, %v411
    %v444 = vadd.f32 %v247, %v412
    %v445 = vadd.f32 %v248, %v413
    %v446 = vadd.f32 %v249, %v414
    %v447 = vadd.f32 %v250, %v415
    %v448 = vadd.f32 %v251, %v416
    %v449 = vadd.f32 %v252, %v417
    %v450 = vadd.f32 %v253, %v418
    %v451 = vadd.f32 %v254, %v419
    %v452 = vadd.f32 %v255, %v420
    %v453 = vadd.f32 %v256, %v421
    %v454 = vadd.f32 %v257, %v422
    %v455 = vadd.f32 %v258, %v423
    %v456 = vadd.f32 %v259, %v424
    %v457 = vadd.f32 %v260, %v425
    %v458 = vadd.f32 %v261, %v426
    %v459 = vadd.f32 %v262, %v427
    %v460 = vadd.f32 %v263, %v428
    %v461 = vmax.f32 %v429, 0.0
    %v462 = vmax.f32 %v430, 0.0
    %v463 = vmax.f32 %v431, 0.0
    %v464 = vmax.f32 %v432, 0.0
    %v465 = vmax.f32 %v433, 0.0
    %v466 = vmax.f32 %v434, 0.0
    %v467 = vmax.f32 %v435, 0.0
    %v468 = vmax.f32 %v436, 0.0
    %v469 = vmax.f32 %v437, 0.0
    %v470 = vmax.f32 %v438, 0.0
    %v471 = vmax.f32 %v439, 0.0
    %v472 = vmax.f32 %v440, 0.0
    %v473 = vmax.f32 %v441, 0.0
    %v474 = vmax.f32 %v442, 0.0
    %v475 = vmax.f32 %v443, 0.0
    %v476 = vmax.f32 %v444, 0.0
    %v477 = vmax.f32 %v445, 0.0
    %v478 = vmax.f32 %v446, 0.0
    %v479 = vmax.f32 %v447, 0.0
    %v480 = vmax.f32 %v448, 0.0
    %v481 = vmax.f32 %v449, 0.0
    %v482 = vmax.f32 %v450, 0.0
    %v483 = vmax.f32 %v451, 0.0
    %v484 = vmax.f32 %v452, 0.0
    %v485 = vmax.f32 %v453, 0.0
    %v486 = vmax.f32 %v454, 0.0
    %v487 = vmax.f32 %v455, 0.0
    %v488 = vmax.f32 %v456, 0.0
    %v489 = vmax.f32 %v457, 0.0
    %v490 = vmax.f32 %v458, 0.0
    %v491 = vmax.f32 %v459, 0.0
    %v492 = vmax.f32 %v460, 0.0
    %v493 = vld [vmem:[%s2] sm:$0xff]
    %v494 = vld [vmem:[%s2 + $0x8] sm:$0xff]
    %v495 = vld [vmem:[%s2 + $0x10] sm:$0xff]
    %v496 = vld [vmem:[%s2 + $0x18] sm:$0xff]
    %v497 = vld [vmem:[%s2 + $0x20] sm:$0xff]
    %v498 = vld [vmem:[%s2 + $0x28] sm:$0xff]
    %v499 = vld [vmem:[%s2 + $0x30] sm:$0xff]
    %v500 = vld [vmem:[%s2 + $0x38] sm:$0xff]
    %v501 = vld [vmem:[%s2 + $0x40] sm:$0xff]
    %v502 = vld [vmem:[%s2 + $0x48] sm:$0xff]
    %v503 = vld [vmem:[%s2 + $0x50] sm:$0xff]
    %v504 = vld [vmem:[%s2 + $0x58] sm:$0xff]
    %v505 = vld [vmem:[%s2 + $0x60] sm:$0xff]
    %v506 = vld [vmem:[%s2 + $0x68] sm:$0xff]
    %v507 = vld [vmem:[%s2 + $0x70] sm:$0xff]
    %v508 = vld [vmem:[%s2 + $0x78] sm:$0xff]
    %509 = vmatprep.subr.mxu0 0.0
    %510 = vmatpush1.msra.mxu0 %v508
    %511 = vmatprep.subr.mxu0 0.0
    %512 = vmatpush1.msra.mxu0 %v507
    %513 = vmatprep.subr.mxu0 0.0
    %514 = vmatpush1.msra.mxu0 %v506
    %515 = vmatprep.subr.mxu0 0.0
    %516 = vmatpush1.msra.mxu0 %v505
    %517 = vmatprep.subr.mxu0 0.0
    %518 = vmatpush1.msra.mxu0 %v504
    %519 = vmatprep.subr.mxu0 0.0
    %520 = vmatpush1.msra.mxu0 %v503
    %521 = vmatprep.subr.mxu0 0.0
    %522 = vmatpush1.msra.mxu0 %v502
    %523 = vmatprep.subr.mxu0 0.0
    %524 = vmatpush1.msra.mxu0 %v501
    %525 = vmatprep.subr.mxu0 0.0
    %526 = vmatpush1.msra.mxu0 %v500
    %527 = vmatprep.subr.mxu0 0.0
    %528 = vmatpush1.msra.mxu0 %v499
    %529 = vmatprep.subr.mxu0 0.0
    %530 = vmatpush1.msra.mxu0 %v498
    %531 = vmatprep.subr.mxu0 0.0
    %532 = vmatpush1.msra.mxu0 %v497
    %533 = vmatprep.subr.mxu0 0.0
    %534 = vmatpush1.msra.mxu0 %v496
    %535 = vmatprep.subr.mxu0 0.0
    %536 = vmatpush1.msra.mxu0 %v495
    %537 = vmatprep.subr.mxu0 0.0
    %538 = vmatpush1.msra.mxu0 %v494
    %539 = vmatprep.subr.mxu0 0.0
    %540 = vmatpush1.msra.mxu0 %v493
    %541 = vmatprep.subr.mxu0 0.0
    %542 = vmatpush2.msra.mxu0 0.0
    %543 = vmatprep.subr.mxu0 0.0
    %544 = vmatpush2.msra.mxu0 0.0
    %545 = vmatprep.subr.mxu0 0.0
    %546 = vmatpush2.msra.mxu0 0.0
    %547 = vmatprep.subr.mxu0 0.0
    %548 = vmatpush2.msra.mxu0 0.0
    %549 = vmatprep.subr.mxu0 0.0
    %550 = vmatpush2.msra.mxu0 0.0
    %551 = vmatprep.subr.mxu0 0.0
    %552 = vmatpush2.msra.mxu0 0.0
    %553 = vmatprep.subr.mxu0 0.0
    %554 = vmatpush2.msra.mxu0 0.0
    %555 = vmatprep.subr.mxu0 0.0
    %556 = vmatpush2.msra.mxu0 0.0
    %557 = vmatprep.subr.mxu0 0.0
    %558 = vmatpush2.msra.mxu0 0.0
    %559 = vmatprep.subr.mxu0 0.0
    %560 = vmatpush2.msra.mxu0 0.0
    %561 = vmatprep.subr.mxu0 0.0
    %562 = vmatpush2.msra.mxu0 0.0
    %563 = vmatprep.subr.mxu0 0.0
    %564 = vmatpush2.msra.mxu0 0.0
    %565 = vmatprep.subr.mxu0 0.0
    %566 = vmatpush2.msra.mxu0 0.0
    %567 = vmatprep.subr.mxu0 0.0
    %568 = vmatpush2.msra.mxu0 0.0
    %569 = vmatprep.subr.mxu0 0.0
    %570 = vmatpush2.msra.mxu0 0.0
    %571 = vmatprep.subr.mxu0 0.0
    %572 = vmatpush2.msra.mxu0 0.0
    %573 = vmatprep.mubr.f32.mxu0 0.0
    %574 = vmatmul.mubr.f32.gmra.mxu0 %v461
    %v575 = vpop.f32.mrf.mxu0
    %v576 = vadd.f32 0.0, %v575
    %v577 = vpop.f32.mrf.mxu0
    %578 = vmatprep.mubr.f32.mxu0 0.0
    %579 = vmatmul.mubr.f32.gmra.mxu0 %v462
    %v580 = vpop.f32.mrf.mxu0
    %v581 = vadd.f32 0.0, %v580
    %v582 = vpop.f32.mrf.mxu0
    %583 = vmatprep.mubr.f32.mxu0 0.0
    %584 = vmatmul.mubr.f32.gmra.mxu0 %v463
    %v585 = vpop.f32.mrf.mxu0
    %v586 = vadd.f32 0.0, %v585
    %v587 = vpop.f32.mrf.mxu0
    %588 = vmatprep.mubr.f32.mxu0 0.0
    %589 = vmatmul.mubr.f32.gmra.mxu0 %v464
    %v590 = vpop.f32.mrf.mxu0
    %v591 = vadd.f32 0.0, %v590
    %v592 = vpop.f32.mrf.mxu0
    %593 = vmatprep.mubr.f32.mxu0 0.0
    %594 = vmatmul.mubr.f32.gmra.mxu0 %v465
    %v595 = vpop.f32.mrf.mxu0
    %v596 = vadd.f32 0.0, %v595
    %v597 = vpop.f32.mrf.mxu0
    %598 = vmatprep.mubr.f32.mxu0 0.0
    %599 = vmatmul.mubr.f32.gmra.mxu0 %v466
    %v600 = vpop.f32.mrf.mxu0
    %v601 = vadd.f32 0.0, %v600
    %v602 = vpop.f32.mrf.mxu0
    %603 = vmatprep.mubr.f32.mxu0 0.0
    %604 = vmatmul.mubr.f32.gmra.mxu0 %v467
    %v605 = vpop.f32.mrf.mxu0
    %v606 = vadd.f32 0.0, %v605
    %v607 = vpop.f32.mrf.mxu0
    %608 = vmatprep.mubr.f32.mxu0 0.0
    %609 = vmatmul.mubr.f32.gmra.mxu0 %v468
    %v610 = vpop.f32.mrf.mxu0
    %v611 = vadd.f32 0.0, %v610
    %v612 = vpop.f32.mrf.mxu0
    %613 = vmatprep.mubr.f32.mxu0 0.0
    %614 = vmatmul.mubr.f32.gmra.mxu0 %v469
    %v615 = vpop.f32.mrf.mxu0
    %v616 = vadd.f32 0.0, %v615
    %v617 = vpop.f32.mrf.mxu0
    %618 = vmatprep.mubr.f32.mxu0 0.0
    %619 = vmatmul.mubr.f32.gmra.mxu0 %v470
    %v620 = vpop.f32.mrf.mxu0
    %v621 = vadd.f32 0.0, %v620
    %v622 = vpop.f32.mrf.mxu0
    %623 = vmatprep.mubr.f32.mxu0 0.0
    %624 = vmatmul.mubr.f32.gmra.mxu0 %v471
    %v625 = vpop.f32.mrf.mxu0
    %v626 = vadd.f32 0.0, %v625
    %v627 = vpop.f32.mrf.mxu0
    %628 = vmatprep.mubr.f32.mxu0 0.0
    %629 = vmatmul.mubr.f32.gmra.mxu0 %v472
    %v630 = vpop.f32.mrf.mxu0
    %v631 = vadd.f32 0.0, %v630
    %v632 = vpop.f32.mrf.mxu0
    %633 = vmatprep.mubr.f32.mxu0 0.0
    %634 = vmatmul.mubr.f32.gmra.mxu0 %v473
    %v635 = vpop.f32.mrf.mxu0
    %v636 = vadd.f32 0.0, %v635
    %v637 = vpop.f32.mrf.mxu0
    %638 = vmatprep.mubr.f32.mxu0 0.0
    %639 = vmatmul.mubr.f32.gmra.mxu0 %v474
    %v640 = vpop.f32.mrf.mxu0
    %v641 = vadd.f32 0.0, %v640
    %v642 = vpop.f32.mrf.mxu0
    %643 = vmatprep.mubr.f32.mxu0 0.0
    %644 = vmatmul.mubr.f32.gmra.mxu0 %v475
    %v645 = vpop.f32.mrf.mxu0
    %v646 = vadd.f32 0.0, %v645
    %v647 = vpop.f32.mrf.mxu0
    %648 = vmatprep.mubr.f32.mxu0 0.0
    %649 = vmatmul.mubr.f32.gmra.mxu0 %v476
    %v650 = vpop.f32.mrf.mxu0
    %v651 = vadd.f32 0.0, %v650
    %v652 = vpop.f32.mrf.mxu0
    %653 = vmatprep.mubr.f32.mxu0 0.0
    %654 = vmatmul.mubr.f32.gmra.mxu0 %v477
    %v655 = vpop.f32.mrf.mxu0
    %v656 = vadd.f32 0.0, %v655
    %v657 = vpop.f32.mrf.mxu0
    %658 = vmatprep.mubr.f32.mxu0 0.0
    %659 = vmatmul.mubr.f32.gmra.mxu0 %v478
    %v660 = vpop.f32.mrf.mxu0
    %v661 = vadd.f32 0.0, %v660
    %v662 = vpop.f32.mrf.mxu0
    %663 = vmatprep.mubr.f32.mxu0 0.0
    %664 = vmatmul.mubr.f32.gmra.mxu0 %v479
    %v665 = vpop.f32.mrf.mxu0
    %v666 = vadd.f32 0.0, %v665
    %v667 = vpop.f32.mrf.mxu0
    %668 = vmatprep.mubr.f32.mxu0 0.0
    %669 = vmatmul.mubr.f32.gmra.mxu0 %v480
    %v670 = vpop.f32.mrf.mxu0
    %v671 = vadd.f32 0.0, %v670
    %v672 = vpop.f32.mrf.mxu0
    %673 = vmatprep.mubr.f32.mxu0 0.0
    %674 = vmatmul.mubr.f32.gmra.mxu0 %v481
    %v675 = vpop.f32.mrf.mxu0
    %v676 = vadd.f32 0.0, %v675
    %v677 = vpop.f32.mrf.mxu0
    %678 = vmatprep.mubr.f32.mxu0 0.0
    %679 = vmatmul.mubr.f32.gmra.mxu0 %v482
    %v680 = vpop.f32.mrf.mxu0
    %v681 = vadd.f32 0.0, %v680
    %v682 = vpop.f32.mrf.mxu0
    %683 = vmatprep.mubr.f32.mxu0 0.0
    %684 = vmatmul.mubr.f32.gmra.mxu0 %v483
    %v685 = vpop.f32.mrf.mxu0
    %v686 = vadd.f32 0.0, %v685
    %v687 = vpop.f32.mrf.mxu0
    %688 = vmatprep.mubr.f32.mxu0 0.0
    %689 = vmatmul.mubr.f32.gmra.mxu0 %v484
    %v690 = vpop.f32.mrf.mxu0
    %v691 = vadd.f32 0.0, %v690
    %v692 = vpop.f32.mrf.mxu0
    %693 = vmatprep.mubr.f32.mxu0 0.0
    %694 = vmatmul.mubr.f32.gmra.mxu0 %v485
    %v695 = vpop.f32.mrf.mxu0
    %v696 = vadd.f32 0.0, %v695
    %v697 = vpop.f32.mrf.mxu0
    %698 = vmatprep.mubr.f32.mxu0 0.0
    %699 = vmatmul.mubr.f32.gmra.mxu0 %v486
    %v700 = vpop.f32.mrf.mxu0
    %v701 = vadd.f32 0.0, %v700
    %v702 = vpop.f32.mrf.mxu0
    %703 = vmatprep.mubr.f32.mxu0 0.0
    %704 = vmatmul.mubr.f32.gmra.mxu0 %v487
    %v705 = vpop.f32.mrf.mxu0
    %v706 = vadd.f32 0.0, %v705
    %v707 = vpop.f32.mrf.mxu0
    %708 = vmatprep.mubr.f32.mxu0 0.0
    %709 = vmatmul.mubr.f32.gmra.mxu0 %v488
    %v710 = vpop.f32.mrf.mxu0
    %v711 = vadd.f32 0.0, %v710
    %v712 = vpop.f32.mrf.mxu0
    %713 = vmatprep.mubr.f32.mxu0 0.0
    %714 = vmatmul.mubr.f32.gmra.mxu0 %v489
    %v715 = vpop.f32.mrf.mxu0
    %v716 = vadd.f32 0.0, %v715
    %v717 = vpop.f32.mrf.mxu0
    %718 = vmatprep.mubr.f32.mxu0 0.0
    %719 = vmatmul.mubr.f32.gmra.mxu0 %v490
    %v720 = vpop.f32.mrf.mxu0
    %v721 = vadd.f32 0.0, %v720
    %v722 = vpop.f32.mrf.mxu0
    %723 = vmatprep.mubr.f32.mxu0 0.0
    %724 = vmatmul.mubr.f32.gmra.mxu0 %v491
    %v725 = vpop.f32.mrf.mxu0
    %v726 = vadd.f32 0.0, %v725
    %v727 = vpop.f32.mrf.mxu0
    %728 = vmatprep.mubr.f32.mxu0 0.0
    %729 = vmatmul.mubr.f32.gmra.mxu0 %v492
    %v730 = vpop.f32.mrf.mxu0
    %v731 = vadd.f32 0.0, %v730
    %v732 = vpop.f32.mrf.mxu0
    %733 = vdwg.mxu0
    %v734 = vmax.f32 %v576, 0.0
    %v735 = vmax.f32 %v581, 0.0
    %v736 = vmax.f32 %v586, 0.0
    %v737 = vmax.f32 %v591, 0.0
    %v738 = vmax.f32 %v596, 0.0
    %v739 = vmax.f32 %v601, 0.0
    %v740 = vmax.f32 %v606, 0.0
    %v741 = vmax.f32 %v611, 0.0
    %v742 = vmax.f32 %v616, 0.0
    %v743 = vmax.f32 %v621, 0.0
    %v744 = vmax.f32 %v626, 0.0
    %v745 = vmax.f32 %v631, 0.0
    %v746 = vmax.f32 %v636, 0.0
    %v747 = vmax.f32 %v641, 0.0
    %v748 = vmax.f32 %v646, 0.0
    %v749 = vmax.f32 %v651, 0.0
    %v750 = vmax.f32 %v656, 0.0
    %v751 = vmax.f32 %v661, 0.0
    %v752 = vmax.f32 %v666, 0.0
    %v753 = vmax.f32 %v671, 0.0
    %v754 = vmax.f32 %v676, 0.0
    %v755 = vmax.f32 %v681, 0.0
    %v756 = vmax.f32 %v686, 0.0
    %v757 = vmax.f32 %v691, 0.0
    %v758 = vmax.f32 %v696, 0.0
    %v759 = vmax.f32 %v701, 0.0
    %v760 = vmax.f32 %v706, 0.0
    %v761 = vmax.f32 %v711, 0.0
    %v762 = vmax.f32 %v716, 0.0
    %v763 = vmax.f32 %v721, 0.0
    %v764 = vmax.f32 %v726, 0.0
    %v765 = vmax.f32 %v731, 0.0
    %v766 = vld [vmem:[%s3] sm:$0xff]
    %v767 = vld [vmem:[%s3 + $0x8] sm:$0xff]
    %v768 = vld [vmem:[%s3 + $0x10] sm:$0xff]
    %v769 = vld [vmem:[%s3 + $0x18] sm:$0xff]
    %v770 = vld [vmem:[%s3 + $0x20] sm:$0xff]
    %v771 = vld [vmem:[%s3 + $0x28] sm:$0xff]
    %v772 = vld [vmem:[%s3 + $0x30] sm:$0xff]
    %v773 = vld [vmem:[%s3 + $0x38] sm:$0xff]
    %v774 = vld [vmem:[%s3 + $0x40] sm:$0xff]
    %v775 = vld [vmem:[%s3 + $0x48] sm:$0xff]
    %v776 = vld [vmem:[%s3 + $0x50] sm:$0xff]
    %v777 = vld [vmem:[%s3 + $0x58] sm:$0xff]
    %v778 = vld [vmem:[%s3 + $0x60] sm:$0xff]
    %v779 = vld [vmem:[%s3 + $0x68] sm:$0xff]
    %v780 = vld [vmem:[%s3 + $0x70] sm:$0xff]
    %v781 = vld [vmem:[%s3 + $0x78] sm:$0xff]
    %782 = vmatprep.subr.mxu0 0.0
    %783 = vmatpush1.msra.mxu0 %v781
    %784 = vmatprep.subr.mxu0 0.0
    %785 = vmatpush1.msra.mxu0 %v780
    %786 = vmatprep.subr.mxu0 0.0
    %787 = vmatpush1.msra.mxu0 %v779
    %788 = vmatprep.subr.mxu0 0.0
    %789 = vmatpush1.msra.mxu0 %v778
    %790 = vmatprep.subr.mxu0 0.0
    %791 = vmatpush1.msra.mxu0 %v777
    %792 = vmatprep.subr.mxu0 0.0
    %793 = vmatpush1.msra.mxu0 %v776
    %794 = vmatprep.subr.mxu0 0.0
    %795 = vmatpush1.msra.mxu0 %v775
    %796 = vmatprep.subr.mxu0 0.0
    %797 = vmatpush1.msra.mxu0 %v774
    %798 = vmatprep.subr.mxu0 0.0
    %799 = vmatpush1.msra.mxu0 %v773
    %800 = vmatprep.subr.mxu0 0.0
    %801 = vmatpush1.msra.mxu0 %v772
    %802 = vmatprep.subr.mxu0 0.0
    %803 = vmatpush1.msra.mxu0 %v771
    %804 = vmatprep.subr.mxu0 0.0
    %805 = vmatpush1.msra.mxu0 %v770
    %806 = vmatprep.subr.mxu0 0.0
    %807 = vmatpush1.msra.mxu0 %v769
    %808 = vmatprep.subr.mxu0 0.0
    %809 = vmatpush1.msra.mxu0 %v768
    %810 = vmatprep.subr.mxu0 0.0
    %811 = vmatpush1.msra.mxu0 %v767
    %812 = vmatprep.subr.mxu0 0.0
    %813 = vmatpush1.msra.mxu0 %v766
    %814 = vmatprep.subr.mxu0 0.0
    %815 = vmatpush2.msra.mxu0 0.0
    %816 = vmatprep.subr.mxu0 0.0
    %817 = vmatpush2.msra.mxu0 0.0
    %818 = vmatprep.subr.mxu0 0.0
    %819 = vmatpush2.msra.mxu0 0.0
    %820 = vmatprep.subr.mxu0 0.0
    %821 = vmatpush2.msra.mxu0 0.0
    %822 = vmatprep.subr.mxu0 0.0
    %823 = vmatpush2.msra.mxu0 0.0
    %824 = vmatprep.subr.mxu0 0.0
    %825 = vmatpush2.msra.mxu0 0.0
    %826 = vmatprep.subr.mxu0 0.0
    %827 = vmatpush2.msra.mxu0 0.0
    %828 = vmatprep.subr.mxu0 0.0
    %829 = vmatpush2.msra.mxu0 0.0
    %830 = vmatprep.subr.mxu0 0.0
    %831 = vmatpush2.msra.mxu0 0.0
    %832 = vmatprep.subr.mxu0 0.0
    %833 = vmatpush2.msra.mxu0 0.0
    %834 = vmatprep.subr.mxu0 0.0
    %835 = vmatpush2.msra.mxu0 0.0
    %836 = vmatprep.subr.mxu0 0.0
    %837 = vmatpush2.msra.mxu0 0.0
    %838 = vmatprep.subr.mxu0 0.0
    %839 = vmatpush2.msra.mxu0 0.0
    %840 = vmatprep.subr.mxu0 0.0
    %841 = vmatpush2.msra.mxu0 0.0
    %842 = vmatprep.subr.mxu0 0.0
    %843 = vmatpush2.msra.mxu0 0.0
    %844 = vmatprep.subr.mxu0 0.0
    %845 = vmatpush2.msra.mxu0 0.0
    %846 = vmatprep.mubr.f32.mxu0 0.0
    %847 = vmatmul.mubr.f32.gmra.mxu0 %v734
    %v848 = vpop.f32.mrf.mxu0
    %v849 = vadd.f32 0.0, %v848
    %v850 = vpop.f32.mrf.mxu0
    %851 = vmatprep.mubr.f32.mxu0 0.0
    %852 = vmatmul.mubr.f32.gmra.mxu0 %v735
    %v853 = vpop.f32.mrf.mxu0
    %v854 = vadd.f32 0.0, %v853
    %v855 = vpop.f32.mrf.mxu0
    %856 = vmatprep.mubr.f32.mxu0 0.0
    %857 = vmatmul.mubr.f32.gmra.mxu0 %v736
    %v858 = vpop.f32.mrf.mxu0
    %v859 = vadd.f32 0.0, %v858
    %v860 = vpop.f32.mrf.mxu0
    %861 = vmatprep.mubr.f32.mxu0 0.0
    %862 = vmatmul.mubr.f32.gmra.mxu0 %v737
    %v863 = vpop.f32.mrf.mxu0
    %v864 = vadd.f32 0.0, %v863
    %v865 = vpop.f32.mrf.mxu0
    %866 = vmatprep.mubr.f32.mxu0 0.0
    %867 = vmatmul.mubr.f32.gmra.mxu0 %v738
    %v868 = vpop.f32.mrf.mxu0
    %v869 = vadd.f32 0.0, %v868
    %v870 = vpop.f32.mrf.mxu0
    %871 = vmatprep.mubr.f32.mxu0 0.0
    %872 = vmatmul.mubr.f32.gmra.mxu0 %v739
    %v873 = vpop.f32.mrf.mxu0
    %v874 = vadd.f32 0.0, %v873
    %v875 = vpop.f32.mrf.mxu0
    %876 = vmatprep.mubr.f32.mxu0 0.0
    %877 = vmatmul.mubr.f32.gmra.mxu0 %v740
    %v878 = vpop.f32.mrf.mxu0
    %v879 = vadd.f32 0.0, %v878
    %v880 = vpop.f32.mrf.mxu0
    %881 = vmatprep.mubr.f32.mxu0 0.0
    %882 = vmatmul.mubr.f32.gmra.mxu0 %v741
    %v883 = vpop.f32.mrf.mxu0
    %v884 = vadd.f32 0.0, %v883
    %v885 = vpop.f32.mrf.mxu0
    %886 = vmatprep.mubr.f32.mxu0 0.0
    %887 = vmatmul.mubr.f32.gmra.mxu0 %v742
    %v888 = vpop.f32.mrf.mxu0
    %v889 = vadd.f32 0.0, %v888
    %v890 = vpop.f32.mrf.mxu0
    %891 = vmatprep.mubr.f32.mxu0 0.0
    %892 = vmatmul.mubr.f32.gmra.mxu0 %v743
    %v893 = vpop.f32.mrf.mxu0
    %v894 = vadd.f32 0.0, %v893
    %v895 = vpop.f32.mrf.mxu0
    %896 = vmatprep.mubr.f32.mxu0 0.0
    %897 = vmatmul.mubr.f32.gmra.mxu0 %v744
    %v898 = vpop.f32.mrf.mxu0
    %v899 = vadd.f32 0.0, %v898
    %v900 = vpop.f32.mrf.mxu0
    %901 = vmatprep.mubr.f32.mxu0 0.0
    %902 = vmatmul.mubr.f32.gmra.mxu0 %v745
    %v903 = vpop.f32.mrf.mxu0
    %v904 = vadd.f32 0.0, %v903
    %v905 = vpop.f32.mrf.mxu0
    %906 = vmatprep.mubr.f32.mxu0 0.0
    %907 = vmatmul.mubr.f32.gmra.mxu0 %v746
    %v908 = vpop.f32.mrf.mxu0
    %v909 = vadd.f32 0.0, %v908
    %v910 = vpop.f32.mrf.mxu0
    %911 = vmatprep.mubr.f32.mxu0 0.0
    %912 = vmatmul.mubr.f32.gmra.mxu0 %v747
    %v913 = vpop.f32.mrf.mxu0
    %v914 = vadd.f32 0.0, %v913
    %v915 = vpop.f32.mrf.mxu0
    %916 = vmatprep.mubr.f32.mxu0 0.0
    %917 = vmatmul.mubr.f32.gmra.mxu0 %v748
    %v918 = vpop.f32.mrf.mxu0
    %v919 = vadd.f32 0.0, %v918
    %v920 = vpop.f32.mrf.mxu0
    %921 = vmatprep.mubr.f32.mxu0 0.0
    %922 = vmatmul.mubr.f32.gmra.mxu0 %v749
    %v923 = vpop.f32.mrf.mxu0
    %v924 = vadd.f32 0.0, %v923
    %v925 = vpop.f32.mrf.mxu0
    %926 = vmatprep.mubr.f32.mxu0 0.0
    %927 = vmatmul.mubr.f32.gmra.mxu0 %v750
    %v928 = vpop.f32.mrf.mxu0
    %v929 = vadd.f32 0.0, %v928
    %v930 = vpop.f32.mrf.mxu0
    %931 = vmatprep.mubr.f32.mxu0 0.0
    %932 = vmatmul.mubr.f32.gmra.mxu0 %v751
    %v933 = vpop.f32.mrf.mxu0
    %v934 = vadd.f32 0.0, %v933
    %v935 = vpop.f32.mrf.mxu0
    %936 = vmatprep.mubr.f32.mxu0 0.0
    %937 = vmatmul.mubr.f32.gmra.mxu0 %v752
    %v938 = vpop.f32.mrf.mxu0
    %v939 = vadd.f32 0.0, %v938
    %v940 = vpop.f32.mrf.mxu0
    %941 = vmatprep.mubr.f32.mxu0 0.0
    %942 = vmatmul.mubr.f32.gmra.mxu0 %v753
    %v943 = vpop.f32.mrf.mxu0
    %v944 = vadd.f32 0.0, %v943
    %v945 = vpop.f32.mrf.mxu0
    %946 = vmatprep.mubr.f32.mxu0 0.0
    %947 = vmatmul.mubr.f32.gmra.mxu0 %v754
    %v948 = vpop.f32.mrf.mxu0
    %v949 = vadd.f32 0.0, %v948
    %v950 = vpop.f32.mrf.mxu0
    %951 = vmatprep.mubr.f32.mxu0 0.0
    %952 = vmatmul.mubr.f32.gmra.mxu0 %v755
    %v953 = vpop.f32.mrf.mxu0
    %v954 = vadd.f32 0.0, %v953
    %v955 = vpop.f32.mrf.mxu0
    %956 = vmatprep.mubr.f32.mxu0 0.0
    %957 = vmatmul.mubr.f32.gmra.mxu0 %v756
    %v958 = vpop.f32.mrf.mxu0
    %v959 = vadd.f32 0.0, %v958
    %v960 = vpop.f32.mrf.mxu0
    %961 = vmatprep.mubr.f32.mxu0 0.0
    %962 = vmatmul.mubr.f32.gmra.mxu0 %v757
    %v963 = vpop.f32.mrf.mxu0
    %v964 = vadd.f32 0.0, %v963
    %v965 = vpop.f32.mrf.mxu0
    %966 = vmatprep.mubr.f32.mxu0 0.0
    %967 = vmatmul.mubr.f32.gmra.mxu0 %v758
    %v968 = vpop.f32.mrf.mxu0
    %v969 = vadd.f32 0.0, %v968
    %v970 = vpop.f32.mrf.mxu0
    %971 = vmatprep.mubr.f32.mxu0 0.0
    %972 = vmatmul.mubr.f32.gmra.mxu0 %v759
    %v973 = vpop.f32.mrf.mxu0
    %v974 = vadd.f32 0.0, %v973
    %v975 = vpop.f32.mrf.mxu0
    %976 = vmatprep.mubr.f32.mxu0 0.0
    %977 = vmatmul.mubr.f32.gmra.mxu0 %v760
    %v978 = vpop.f32.mrf.mxu0
    %v979 = vadd.f32 0.0, %v978
    %v980 = vpop.f32.mrf.mxu0
    %981 = vmatprep.mubr.f32.mxu0 0.0
    %982 = vmatmul.mubr.f32.gmra.mxu0 %v761
    %v983 = vpop.f32.mrf.mxu0
    %v984 = vadd.f32 0.0, %v983
    %v985 = vpop.f32.mrf.mxu0
    %986 = vmatprep.mubr.f32.mxu0 0.0
    %987 = vmatmul.mubr.f32.gmra.mxu0 %v762
    %v988 = vpop.f32.mrf.mxu0
    %v989 = vadd.f32 0.0, %v988
    %v990 = vpop.f32.mrf.mxu0
    %991 = vmatprep.mubr.f32.mxu0 0.0
    %992 = vmatmul.mubr.f32.gmra.mxu0 %v763
    %v993 = vpop.f32.mrf.mxu0
    %v994 = vadd.f32 0.0, %v993
    %v995 = vpop.f32.mrf.mxu0
    %996 = vmatprep.mubr.f32.mxu0 0.0
    %997 = vmatmul.mubr.f32.gmra.mxu0 %v764
    %v998 = vpop.f32.mrf.mxu0
    %v999 = vadd.f32 0.0, %v998
    %v1000 = vpop.f32.mrf.mxu0
    %1001 = vmatprep.mubr.f32.mxu0 0.0
    %1002 = vmatmul.mubr.f32.gmra.mxu0 %v765
    %v1003 = vpop.f32.mrf.mxu0
    %v1004 = vadd.f32 0.0, %v1003
    %v1005 = vpop.f32.mrf.mxu0
    %1006 = vdwg.mxu0
    %v1007 = vmax.f32 %v849, 0.0
    %v1008 = vmax.f32 %v854, 0.0
    %v1009 = vmax.f32 %v859, 0.0
    %v1010 = vmax.f32 %v864, 0.0
    %v1011 = vmax.f32 %v869, 0.0
    %v1012 = vmax.f32 %v874, 0.0
    %v1013 = vmax.f32 %v879, 0.0
    %v1014 = vmax.f32 %v884, 0.0
    %v1015 = vmax.f32 %v889, 0.0
    %v1016 = vmax.f32 %v894, 0.0
    %v1017 = vmax.f32 %v899, 0.0
    %v1018 = vmax.f32 %v904, 0.0
    %v1019 = vmax.f32 %v909, 0.0
    %v1020 = vmax.f32 %v914, 0.0
    %v1021 = vmax.f32 %v919, 0.0
    %v1022 = vmax.f32 %v924, 0.0
    %v1023 = vmax.f32 %v929, 0.0
    %v1024 = vmax.f32 %v934, 0.0
    %v1025 = vmax.f32 %v939, 0.0
    %v1026 = vmax.f32 %v944, 0.0
    %v1027 = vmax.f32 %v949, 0.0
    %v1028 = vmax.f32 %v954, 0.0
    %v1029 = vmax.f32 %v959, 0.0
    %v1030 = vmax.f32 %v964, 0.0
    %v1031 = vmax.f32 %v969, 0.0
    %v1032 = vmax.f32 %v974, 0.0
    %v1033 = vmax.f32 %v979, 0.0
    %v1034 = vmax.f32 %v984, 0.0
    %v1035 = vmax.f32 %v989, 0.0
    %v1036 = vmax.f32 %v994, 0.0
    %v1037 = vmax.f32 %v999, 0.0
    %v1038 = vmax.f32 %v1004, 0.0
    %v1039 = vld [vmem:[#allocation2] sm:$0xff]
    %v1040 = vld [vmem:[#allocation2 + $0x8] sm:$0xff]
    %v1041 = vld [vmem:[#allocation2 + $0x10] sm:$0xff]
    %v1042 = vld [vmem:[#allocation2 + $0x18] sm:$0xff]
    %v1043 = vld [vmem:[#allocation2 + $0x20] sm:$0xff]
    %v1044 = vld [vmem:[#allocation2 + $0x28] sm:$0xff]
    %v1045 = vld [vmem:[#allocation2 + $0x30] sm:$0xff]
    %v1046 = vld [vmem:[#allocation2 + $0x38] sm:$0xff]
    %v1047 = vld [vmem:[#allocation2 + $0x40] sm:$0xff]
    %v1048 = vld [vmem:[#allocation2 + $0x48] sm:$0xff]
    %v1049 = vld [vmem:[#allocation2 + $0x50] sm:$0xff]
    %v1050 = vld [vmem:[#allocation2 + $0x58] sm:$0xff]
    %v1051 = vld [vmem:[#allocation2 + $0x60] sm:$0xff]
    %v1052 = vld [vmem:[#allocation2 + $0x68] sm:$0xff]
    %v1053 = vld [vmem:[#allocation2 + $0x70] sm:$0xff]
    %v1054 = vld [vmem:[#allocation2 + $0x78] sm:$0xff]
    %1055 = vmatprep.subr.mxu0 0.0
    %1056 = vmatpush1.msra.mxu0 %v1054
    %1057 = vmatprep.subr.mxu0 0.0
    %1058 = vmatpush1.msra.mxu0 %v1053
    %1059 = vmatprep.subr.mxu0 0.0
    %1060 = vmatpush1.msra.mxu0 %v1052
    %1061 = vmatprep.subr.mxu0 0.0
    %1062 = vmatpush1.msra.mxu0 %v1051
    %1063 = vmatprep.subr.mxu0 0.0
    %1064 = vmatpush1.msra.mxu0 %v1050
    %1065 = vmatprep.subr.mxu0 0.0
    %1066 = vmatpush1.msra.mxu0 %v1049
    %1067 = vmatprep.subr.mxu0 0.0
    %1068 = vmatpush1.msra.mxu0 %v1048
    %1069 = vmatprep.subr.mxu0 0.0
    %1070 = vmatpush1.msra.mxu0 %v1047
    %1071 = vmatprep.subr.mxu0 0.0
    %1072 = vmatpush1.msra.mxu0 %v1046
    %1073 = vmatprep.subr.mxu0 0.0
    %1074 = vmatpush1.msra.mxu0 %v1045
    %1075 = vmatprep.subr.mxu0 0.0
    %1076 = vmatpush1.msra.mxu0 %v1044
    %1077 = vmatprep.subr.mxu0 0.0
    %1078 = vmatpush1.msra.mxu0 %v1043
    %1079 = vmatprep.subr.mxu0 0.0
    %1080 = vmatpush1.msra.mxu0 %v1042
    %1081 = vmatprep.subr.mxu0 0.0
    %1082 = vmatpush1.msra.mxu0 %v1041
    %1083 = vmatprep.subr.mxu0 0.0
    %1084 = vmatpush1.msra.mxu0 %v1040
    %1085 = vmatprep.subr.mxu0 0.0
    %1086 = vmatpush1.msra.mxu0 %v1039
    %1087 = vmatprep.subr.mxu0 0.0
    %1088 = vmatpush2.msra.mxu0 0.0
    %1089 = vmatprep.subr.mxu0 0.0
    %1090 = vmatpush2.msra.mxu0 0.0
    %1091 = vmatprep.subr.mxu0 0.0
    %1092 = vmatpush2.msra.mxu0 0.0
    %1093 = vmatprep.subr.mxu0 0.0
    %1094 = vmatpush2.msra.mxu0 0.0
    %1095 = vmatprep.subr.mxu0 0.0
    %1096 = vmatpush2.msra.mxu0 0.0
    %1097 = vmatprep.subr.mxu0 0.0
    %1098 = vmatpush2.msra.mxu0 0.0
    %1099 = vmatprep.subr.mxu0 0.0
    %1100 = vmatpush2.msra.mxu0 0.0
    %1101 = vmatprep.subr.mxu0 0.0
    %1102 = vmatpush2.msra.mxu0 0.0
    %1103 = vmatprep.subr.mxu0 0.0
    %1104 = vmatpush2.msra.mxu0 0.0
    %1105 = vmatprep.subr.mxu0 0.0
    %1106 = vmatpush2.msra.mxu0 0.0
    %1107 = vmatprep.subr.mxu0 0.0
    %1108 = vmatpush2.msra.mxu0 0.0
    %1109 = vmatprep.subr.mxu0 0.0
    %1110 = vmatpush2.msra.mxu0 0.0
    %1111 = vmatprep.subr.mxu0 0.0
    %1112 = vmatpush2.msra.mxu0 0.0
    %1113 = vmatprep.subr.mxu0 0.0
    %1114 = vmatpush2.msra.mxu0 0.0
    %1115 = vmatprep.subr.mxu0 0.0
    %1116 = vmatpush2.msra.mxu0 0.0
    %1117 = vmatprep.subr.mxu0 0.0
    %1118 = vmatpush2.msra.mxu0 0.0
    %1119 = vmatprep.mubr.f32.mxu0 0.0
    %1120 = vmatmul.mubr.f32.gmra.mxu0 %v1007
    %v1121 = vpop.f32.mrf.mxu0
    %v1122 = vadd.f32 0.0, %v1121
    %v1123 = vpop.f32.mrf.mxu0
    %1124 = vmatprep.mubr.f32.mxu0 0.0
    %1125 = vmatmul.mubr.f32.gmra.mxu0 %v1008
    %v1126 = vpop.f32.mrf.mxu0
    %v1127 = vadd.f32 0.0, %v1126
    %v1128 = vpop.f32.mrf.mxu0
    %1129 = vmatprep.mubr.f32.mxu0 0.0
    %1130 = vmatmul.mubr.f32.gmra.mxu0 %v1009
    %v1131 = vpop.f32.mrf.mxu0
    %v1132 = vadd.f32 0.0, %v1131
    %v1133 = vpop.f32.mrf.mxu0
    %1134 = vmatprep.mubr.f32.mxu0 0.0
    %1135 = vmatmul.mubr.f32.gmra.mxu0 %v1010
    %v1136 = vpop.f32.mrf.mxu0
    %v1137 = vadd.f32 0.0, %v1136
    %v1138 = vpop.f32.mrf.mxu0
    %1139 = vmatprep.mubr.f32.mxu0 0.0
    %1140 = vmatmul.mubr.f32.gmra.mxu0 %v1011
    %v1141 = vpop.f32.mrf.mxu0
    %v1142 = vadd.f32 0.0, %v1141
    %v1143 = vpop.f32.mrf.mxu0
    %1144 = vmatprep.mubr.f32.mxu0 0.0
    %1145 = vmatmul.mubr.f32.gmra.mxu0 %v1012
    %v1146 = vpop.f32.mrf.mxu0
    %v1147 = vadd.f32 0.0, %v1146
    %v1148 = vpop.f32.mrf.mxu0
    %1149 = vmatprep.mubr.f32.mxu0 0.0
    %1150 = vmatmul.mubr.f32.gmra.mxu0 %v1013
    %v1151 = vpop.f32.mrf.mxu0
    %v1152 = vadd.f32 0.0, %v1151
    %v1153 = vpop.f32.mrf.mxu0
    %1154 = vmatprep.mubr.f32.mxu0 0.0
    %1155 = vmatmul.mubr.f32.gmra.mxu0 %v1014
    %v1156 = vpop.f32.mrf.mxu0
    %v1157 = vadd.f32 0.0, %v1156
    %v1158 = vpop.f32.mrf.mxu0
    %1159 = vmatprep.mubr.f32.mxu0 0.0
    %1160 = vmatmul.mubr.f32.gmra.mxu0 %v1015
    %v1161 = vpop.f32.mrf.mxu0
    %v1162 = vadd.f32 0.0, %v1161
    %v1163 = vpop.f32.mrf.mxu0
    %1164 = vmatprep.mubr.f32.mxu0 0.0
    %1165 = vmatmul.mubr.f32.gmra.mxu0 %v1016
    %v1166 = vpop.f32.mrf.mxu0
    %v1167 = vadd.f32 0.0, %v1166
    %v1168 = vpop.f32.mrf.mxu0
    %1169 = vmatprep.mubr.f32.mxu0 0.0
    %1170 = vmatmul.mubr.f32.gmra.mxu0 %v1017
    %v1171 = vpop.f32.mrf.mxu0
    %v1172 = vadd.f32 0.0, %v1171
    %v1173 = vpop.f32.mrf.mxu0
    %1174 = vmatprep.mubr.f32.mxu0 0.0
    %1175 = vmatmul.mubr.f32.gmra.mxu0 %v1018
    %v1176 = vpop.f32.mrf.mxu0
    %v1177 = vadd.f32 0.0, %v1176
    %v1178 = vpop.f32.mrf.mxu0
    %1179 = vmatprep.mubr.f32.mxu0 0.0
    %1180 = vmatmul.mubr.f32.gmra.mxu0 %v1019
    %v1181 = vpop.f32.mrf.mxu0
    %v1182 = vadd.f32 0.0, %v1181
    %v1183 = vpop.f32.mrf.mxu0
    %1184 = vmatprep.mubr.f32.mxu0 0.0
    %1185 = vmatmul.mubr.f32.gmra.mxu0 %v1020
    %v1186 = vpop.f32.mrf.mxu0
    %v1187 = vadd.f32 0.0, %v1186
    %v1188 = vpop.f32.mrf.mxu0
    %1189 = vmatprep.mubr.f32.mxu0 0.0
    %1190 = vmatmul.mubr.f32.gmra.mxu0 %v1021
    %v1191 = vpop.f32.mrf.mxu0
    %v1192 = vadd.f32 0.0, %v1191
    %v1193 = vpop.f32.mrf.mxu0
    %1194 = vmatprep.mubr.f32.mxu0 0.0
    %1195 = vmatmul.mubr.f32.gmra.mxu0 %v1022
    %v1196 = vpop.f32.mrf.mxu0
    %v1197 = vadd.f32 0.0, %v1196
    %v1198 = vpop.f32.mrf.mxu0
    %1199 = vmatprep.mubr.f32.mxu0 0.0
    %1200 = vmatmul.mubr.f32.gmra.mxu0 %v1023
    %v1201 = vpop.f32.mrf.mxu0
    %v1202 = vadd.f32 0.0, %v1201
    %v1203 = vpop.f32.mrf.mxu0
    %1204 = vmatprep.mubr.f32.mxu0 0.0
    %1205 = vmatmul.mubr.f32.gmra.mxu0 %v1024
    %v1206 = vpop.f32.mrf.mxu0
    %v1207 = vadd.f32 0.0, %v1206
    %v1208 = vpop.f32.mrf.mxu0
    %1209 = vmatprep.mubr.f32.mxu0 0.0
    %1210 = vmatmul.mubr.f32.gmra.mxu0 %v1025
    %v1211 = vpop.f32.mrf.mxu0
    %v1212 = vadd.f32 0.0, %v1211
    %v1213 = vpop.f32.mrf.mxu0
    %1214 = vmatprep.mubr.f32.mxu0 0.0
    %1215 = vmatmul.mubr.f32.gmra.mxu0 %v1026
    %v1216 = vpop.f32.mrf.mxu0
    %v1217 = vadd.f32 0.0, %v1216
    %v1218 = vpop.f32.mrf.mxu0
    %1219 = vmatprep.mubr.f32.mxu0 0.0
    %1220 = vmatmul.mubr.f32.gmra.mxu0 %v1027
    %v1221 = vpop.f32.mrf.mxu0
    %v1222 = vadd.f32 0.0, %v1221
    %v1223 = vpop.f32.mrf.mxu0
    %1224 = vmatprep.mubr.f32.mxu0 0.0
    %1225 = vmatmul.mubr.f32.gmra.mxu0 %v1028
    %v1226 = vpop.f32.mrf.mxu0
    %v1227 = vadd.f32 0.0, %v1226
    %v1228 = vpop.f32.mrf.mxu0
    %1229 = vmatprep.mubr.f32.mxu0 0.0
    %1230 = vmatmul.mubr.f32.gmra.mxu0 %v1029
    %v1231 = vpop.f32.mrf.mxu0
    %v1232 = vadd.f32 0.0, %v1231
    %v1233 = vpop.f32.mrf.mxu0
    %1234 = vmatprep.mubr.f32.mxu0 0.0
    %1235 = vmatmul.mubr.f32.gmra.mxu0 %v1030
    %v1236 = vpop.f32.mrf.mxu0
    %v1237 = vadd.f32 0.0, %v1236
    %v1238 = vpop.f32.mrf.mxu0
    %1239 = vmatprep.mubr.f32.mxu0 0.0
    %1240 = vmatmul.mubr.f32.gmra.mxu0 %v1031
    %v1241 = vpop.f32.mrf.mxu0
    %v1242 = vadd.f32 0.0, %v1241
    %v1243 = vpop.f32.mrf.mxu0
    %1244 = vmatprep.mubr.f32.mxu0 0.0
    %1245 = vmatmul.mubr.f32.gmra.mxu0 %v1032
    %v1246 = vpop.f32.mrf.mxu0
    %v1247 = vadd.f32 0.0, %v1246
    %v1248 = vpop.f32.mrf.mxu0
    %1249 = vmatprep.mubr.f32.mxu0 0.0
    %1250 = vmatmul.mubr.f32.gmra.mxu0 %v1033
    %v1251 = vpop.f32.mrf.mxu0
    %v1252 = vadd.f32 0.0, %v1251
    %v1253 = vpop.f32.mrf.mxu0
    %1254 = vmatprep.mubr.f32.mxu0 0.0
    %1255 = vmatmul.mubr.f32.gmra.mxu0 %v1034
    %v1256 = vpop.f32.mrf.mxu0
    %v1257 = vadd.f32 0.0, %v1256
    %v1258 = vpop.f32.mrf.mxu0
    %1259 = vmatprep.mubr.f32.mxu0 0.0
    %1260 = vmatmul.mubr.f32.gmra.mxu0 %v1035
    %v1261 = vpop.f32.mrf.mxu0
    %v1262 = vadd.f32 0.0, %v1261
    %v1263 = vpop.f32.mrf.mxu0
    %1264 = vmatprep.mubr.f32.mxu0 0.0
    %1265 = vmatmul.mubr.f32.gmra.mxu0 %v1036
    %v1266 = vpop.f32.mrf.mxu0
    %v1267 = vadd.f32 0.0, %v1266
    %v1268 = vpop.f32.mrf.mxu0
    %1269 = vmatprep.mubr.f32.mxu0 0.0
    %1270 = vmatmul.mubr.f32.gmra.mxu0 %v1037
    %v1271 = vpop.f32.mrf.mxu0
    %v1272 = vadd.f32 0.0, %v1271
    %v1273 = vpop.f32.mrf.mxu0
    %1274 = vmatprep.mubr.f32.mxu0 0.0
    %1275 = vmatmul.mubr.f32.gmra.mxu0 %v1038
    %v1276 = vpop.f32.mrf.mxu0
    %v1277 = vadd.f32 0.0, %v1276
    %v1278 = vpop.f32.mrf.mxu0
    %1279 = vdwg.mxu0
    %1280 = vst [vmem:[#allocation5] sm:$0xff] %v1122
    %1281 = vst [vmem:[#allocation5 + $0x8] sm:$0xff] %v1127
    %1282 = vst [vmem:[#allocation5 + $0x10] sm:$0xff] %v1132
    %1283 = vst [vmem:[#allocation5 + $0x18] sm:$0xff] %v1137
    %1284 = vst [vmem:[#allocation5 + $0x20] sm:$0xff] %v1142
    %1285 = vst [vmem:[#allocation5 + $0x28] sm:$0xff] %v1147
    %1286 = vst [vmem:[#allocation5 + $0x30] sm:$0xff] %v1152
    %1287 = vst [vmem:[#allocation5 + $0x38] sm:$0xff] %v1157
    %1288 = vst [vmem:[#allocation5 + $0x40] sm:$0xff] %v1162
    %1289 = vst [vmem:[#allocation5 + $0x48] sm:$0xff] %v1167
    %1290 = vst [vmem:[#allocation5 + $0x50] sm:$0xff] %v1172
    %1291 = vst [vmem:[#allocation5 + $0x58] sm:$0xff] %v1177
    %1292 = vst [vmem:[#allocation5 + $0x60] sm:$0xff] %v1182
    %1293 = vst [vmem:[#allocation5 + $0x68] sm:$0xff] %v1187
    %1294 = vst [vmem:[#allocation5 + $0x70] sm:$0xff] %v1192
    %1295 = vst [vmem:[#allocation5 + $0x78] sm:$0xff] %v1197
    %1296 = vst [vmem:[#allocation5 + $0x80] sm:$0xff] %v1202
    %1297 = vst [vmem:[#allocation5 + $0x88] sm:$0xff] %v1207
    %1298 = vst [vmem:[#allocation5 + $0x90] sm:$0xff] %v1212
    %1299 = vst [vmem:[#allocation5 + $0x98] sm:$0xff] %v1217
    %1300 = vst [vmem:[#allocation5 + $0xa0] sm:$0xff] %v1222
    %1301 = vst [vmem:[#allocation5 + $0xa8] sm:$0xff] %v1227
    %1302 = vst [vmem:[#allocation5 + $0xb0] sm:$0xff] %v1232
    %1303 = vst [vmem:[#allocation5 + $0xb8] sm:$0xff] %v1237
    %1304 = vst [vmem:[#allocation5 + $0xc0] sm:$0xff] %v1242
    %1305 = vst [vmem:[#allocation5 + $0xc8] sm:$0xff] %v1247
    %1306 = vst [vmem:[#allocation5 + $0xd0] sm:$0xff] %v1252
    %1307 = vst [vmem:[#allocation5 + $0xd8] sm:$0xff] %v1257
    %1308 = vst [vmem:[#allocation5 + $0xe0] sm:$0xff] %v1262
    %1309 = vst [vmem:[#allocation5 + $0xe8] sm:$0xff] %v1267
    %1310 = vst [vmem:[#allocation5 + $0xf0] sm:$0xff] %v1272
    %1311 = vst [vmem:[#allocation5 + $0xf8] sm:$0xff] %v1277
    // Predicated region
    $region26: #{tpu_custom_call.1} parent=1 // pred_check
      _
    $region27: #{tpu_custom_call.1} parent=1 // pred_check_branch
      %1313 = sbr.rel (0) target = $region29
    $region28: #{tpu_custom_call.1} parent=1 // pred_region
      %s1315 = ssub.s32 4096, 4096
      %1316 = vsyncadd [#allocation4], %s1315
      %s1317 = sshll.u32 [#allocation5], 4
      %s1318 = int_to_ptr.vmem [resolvable:$true] %s1317
      %1323 = dma.vmem_to_hbm [thread:$0]  %s1318, 4096, %s5, [#allocation4], 128, 128, 8
    $region29: #{tpu_custom_call.1} parent=1 // pred_fallthru
      _
    // Predicated region
    $region30: #{tpu_custom_call.1} parent=1 // pred_check
      _
    $region31: #{tpu_custom_call.1} parent=1 // pred_check_branch
      %1325 = sbr.rel (0) target = $region33
    $region32: #{tpu_custom_call.1} parent=1 // pred_region
      %1326 = dma.done [#allocation4], 4096
    $region33: #{tpu_custom_call.1} parent=1 // pred_fallthru
      _
    %1327 = vsyncpa [#allocation3], 1
    %1328 = vsyncpa [#allocation4], 1

</llo_original>
